<compile_context>
chip_gen: v6e
topology: v6e:2x2x1
jax: 0.10.0
libtpu: 0.0.40
codegen_flags: <defaults>
</compile_context>

<pallas_src>
import functools

import jax
import jax.numpy as jnp
from jax.experimental import pallas as pl
from jax.experimental.pallas import tpu as pltpu

LANE = 128      # vreg lane width (last dim)
SUBLANE = 8     # vreg sublane count (second-to-last dim)


def _round_up(x, m):
    return (x + m - 1) // m * m


# ----------------------------------------------------------------------------
# Fused kernel: fc1(ReLU) -> fc2(ReLU) -> fc_means(ReLU).  BatchNorm is folded
# into fc1's weights/bias on the host.  All operands are lane-dense.
# ----------------------------------------------------------------------------
def _gaze_unit_kernel(x_ref, w1_ref, b1_ref, w2_ref, b2_ref, w3_ref, b3_ref,
                      o_ref):
    # fc1: bf16 x bf16 -> f32 accumulation, bias + ReLU epilogue.
    h = jnp.dot(x_ref[...], w1_ref[...], preferred_element_type=jnp.float32)
    h = jnp.maximum(h + b1_ref[...], 0.0)

    # fc2
    h = jnp.dot(h.astype(jnp.bfloat16), w2_ref[...],
                preferred_element_type=jnp.float32)
    h = jnp.maximum(h + b2_ref[...], 0.0)

    # fc_means (output padded to 128 lanes; real columns sliced in wrapper)
    h = jnp.dot(h.astype(jnp.bfloat16), w3_ref[...],
                preferred_element_type=jnp.float32)
    h = jnp.maximum(h + b3_ref[...], 0.0)

    o_ref[...] = h.astype(o_ref.dtype)


def gaze_model_unit(params, x, *, training=True, eps=1e-5, tile_b=512):
    """Forward pass of GazeModelUnit.  x: (B, input_dim) f32 -> (B, 2) f32."""
    B, D = x.shape
    H = params["w1"].shape[1]
    n_out = params["w3"].shape[1]

    # ---- BatchNorm statistics (full batch, computed OUTSIDE the kernel so a
    # batch-tiled grid never sees per-tile statistics) ----
    if training:
        mean = jnp.mean(x, axis=0)
        var = jnp.mean((x - mean) ** 2, axis=0)        # biased, like PyTorch's normalizer
    else:
        mean = params["running_mean"]
        var = params["running_var"]
    scale = params["gamma"] * jax.lax.rsqrt(var + eps)  # (D,)
    shift = params["beta"] - mean * scale               # (D,)

    # ---- Fold BatchNorm into fc1 (f32 math, then cast to bf16) ----
    w1_f = params["w1"] * scale[:, None]                 # (D, H)
    b1_f = params["b1"] + shift @ params["w1"]           # (H,)

    # ---- Pad everything to lane-dense shapes; pad batch to the tile ----
    D_pad = _round_up(D, LANE)
    H_pad = _round_up(H, LANE)
    O_pad = _round_up(n_out, LANE)
    tb = min(tile_b, _round_up(B, SUBLANE))              # multiple of 8
    B_pad = _round_up(B, tb)

    x_p = jnp.zeros((B_pad, D_pad), jnp.bfloat16).at[:B, :D].set(
        x.astype(jnp.bfloat16))                           # bf16 input: half the HBM bytes
    w1_p = jnp.zeros((D_pad, H_pad), jnp.bfloat16).at[:D, :H].set(
        w1_f.astype(jnp.bfloat16))
    b1_p = jnp.zeros((1, H_pad), jnp.float32).at[0, :H].set(b1_f)
    w2_p = jnp.zeros((H_pad, H_pad), jnp.bfloat16).at[:H, :H].set(
        params["w2"].astype(jnp.bfloat16))
    b2_p = jnp.zeros((1, H_pad), jnp.float32).at[0, :H].set(params["b2"])
    w3_p = jnp.zeros((H_pad, O_pad), jnp.bfloat16).at[:H, :n_out].set(
        params["w3"].astype(jnp.bfloat16))
    b3_p = jnp.zeros((1, O_pad), jnp.float32).at[0, :n_out].set(params["b3"])

    def resident(shape):
        # Same block every grid step -> DMA'd once, stays resident in VMEM.
        return pl.BlockSpec(shape, lambda i: (0, 0))

    out_padded = pl.pallas_call(
        _gaze_unit_kernel,
        out_shape=jax.ShapeDtypeStruct((B_pad, O_pad), jnp.float32),
        grid=(B_pad // tb,),
        in_specs=[
            pl.BlockSpec((tb, D_pad), lambda i: (i, 0)),   # x: tiled over batch
            resident((D_pad, H_pad)),                      # w1 (BN folded)
            resident((1, H_pad)),                          # b1 (BN folded)
            resident((H_pad, H_pad)),                      # w2
            resident((1, H_pad)),                          # b2
            resident((H_pad, O_pad)),                      # w3
            resident((1, O_pad)),                          # b3
        ],
        out_specs=pl.BlockSpec((tb, O_pad), lambda i: (i, 0)),
        compiler_params=pltpu.CompilerParams(
            dimension_semantics=("parallel",)),            # megacore on v7x
    )(x_p, w1_p, b1_p, w2_p, b2_p, w3_p, b3_p)

    return out_padded[:B, :n_out]


# ----------------------------------------------------------------------------
if __name__ == "__main__":
    INPUT_DIM = 32
    N_HIDDEN = 64
    BATCH = 8

    key = jax.random.PRNGKey(0)
    k_x, k1, k2, k3, k4, k5, k6 = jax.random.split(key, 7)

    def uinit(k, shape, fan_in):
        bound = 1.0 / jnp.sqrt(fan_in)
        return jax.random.uniform(k, shape, jnp.float32, -bound, bound)

    params = {
        # BatchNorm1d affine params + running stats (PyTorch defaults), 1-D.
        "gamma": jnp.ones((INPUT_DIM,), jnp.float32),
        "beta": jnp.zeros((INPUT_DIM,), jnp.float32),
        "running_mean": jnp.zeros((INPUT_DIM,), jnp.float32),
        "running_var": jnp.ones((INPUT_DIM,), jnp.float32),
        # Linear weights stored (in, out) in f32; folded/padded/cast to bf16
        # in the wrapper before the kernel sees them.
        "w1": uinit(k1, (INPUT_DIM, N_HIDDEN), INPUT_DIM),
        "b1": uinit(k2, (N_HIDDEN,), INPUT_DIM),
        "w2": uinit(k3, (N_HIDDEN, N_HIDDEN), N_HIDDEN),
        "b2": uinit(k4, (N_HIDDEN,), N_HIDDEN),
        "w3": uinit(k5, (N_HIDDEN, 2), N_HIDDEN),
        "b3": uinit(k6, (2,), N_HIDDEN),
    }

    x = jax.random.normal(k_x, (BATCH, INPUT_DIM), jnp.float32)

    fwd = jax.jit(functools.partial(gaze_model_unit, training=True))
    out = fwd(params, x)
    jax.block_until_ready(out)

    # Plain-JAX f32 reference (PyTorch train-mode semantics).
    def ref_forward(p, x, eps=1e-5):
        mean = jnp.mean(x, axis=0)
        var = jnp.mean((x - mean) ** 2, axis=0)
        h = (x - mean) / jnp.sqrt(var + eps) * p["gamma"] + p["beta"]
        h = jnp.maximum(h @ p["w1"] + p["b1"], 0.0)
        h = jnp.maximum(h @ p["w2"] + p["b2"], 0.0)
        h = jnp.maximum(h @ p["w3"] + p["b3"], 0.0)
        return h

    ref = ref_forward(params, x)
    assert out.shape == (BATCH, 2)
    assert bool(jnp.all(jnp.isfinite(out)))
    assert bool(jnp.all(out >= 0.0))  # final ReLU head
    # bf16 MXU operands -> modest tolerance vs the f32 reference.
    err = float(jnp.max(jnp.abs(out - ref)))
    assert err < 1e-1, err

    # Also exercise eval mode (running stats path / BN fold).
    out_eval = jax.jit(functools.partial(gaze_model_unit, training=False))(params, x)
    jax.block_until_ready(out_eval)
    assert out_eval.shape == (BATCH, 2)
    assert bool(jnp.all(jnp.isfinite(out_eval)))

    print("KERNEL_OK")
</pallas_src>

<mosaic_0001>
module attributes {stable_mosaic.version = 11 : i64} {
  func.func @_gaze_unit_kernel(%arg0: i32, %arg1: memref<8x128xbf16, #tpu.memory_space<vmem>>, %arg2: memref<128x128xbf16, #tpu.memory_space<vmem>>, %arg3: memref<1x128xf32, #tpu.memory_space<vmem>>, %arg4: memref<128x128xbf16, #tpu.memory_space<vmem>>, %arg5: memref<1x128xf32, #tpu.memory_space<vmem>>, %arg6: memref<128x128xbf16, #tpu.memory_space<vmem>>, %arg7: memref<1x128xf32, #tpu.memory_space<vmem>>, %arg8: memref<8x128xf32, #tpu.memory_space<vmem>>) attributes {dimension_semantics = [#tpu.dimension_semantics<parallel>], iteration_bounds = array<i64: 1>, scalar_prefetch = 0 : i64, scratch_operands = 0 : i64, tpu.core_type = #tpu.core_type<tc>, window_params = [{transform_indices = @transform_0, window_bounds = array<i64: 8, 128>}, {pipeline_mode = #tpu.pipeline_mode<synchronous>, transform_indices = @transform_1, window_bounds = array<i64: 128, 128>}, {pipeline_mode = #tpu.pipeline_mode<synchronous>, transform_indices = @transform_2, window_bounds = array<i64: 1, 128>}, {pipeline_mode = #tpu.pipeline_mode<synchronous>, transform_indices = @transform_3, window_bounds = array<i64: 128, 128>}, {pipeline_mode = #tpu.pipeline_mode<synchronous>, transform_indices = @transform_4, window_bounds = array<i64: 1, 128>}, {pipeline_mode = #tpu.pipeline_mode<synchronous>, transform_indices = @transform_5, window_bounds = array<i64: 128, 128>}, {pipeline_mode = #tpu.pipeline_mode<synchronous>, transform_indices = @transform_6, window_bounds = array<i64: 1, 128>}, {transform_indices = @transform_7, window_bounds = array<i64: 8, 128>}]} {
    %c0 = arith.constant 0 : index
    %c0_0 = arith.constant 0 : index
    %0 = vector.load %arg1[%c0, %c0_0] : memref<8x128xbf16, #tpu.memory_space<vmem>>, vector<8x128xbf16>
    %c0_1 = arith.constant 0 : index
    %c0_2 = arith.constant 0 : index
    %1 = vector.load %arg2[%c0_1, %c0_2] : memref<128x128xbf16, #tpu.memory_space<vmem>>, vector<128x128xbf16>
    %cst = arith.constant dense<0.000000e+00> : vector<8x128xf32>
    %2 = tpu.matmul %0, %1, %cst {dimension_numbers = #tpu.dot_dimension_numbers<[1], [0], [0], [1], [0, 0, 1, 1], [], []>} : vector<8x128xbf16>, vector<128x128xbf16>, vector<8x128xf32> -> vector<8x128xf32>
    %c0_3 = arith.constant 0 : index
    %c0_4 = arith.constant 0 : index
    %3 = vector.load %arg3[%c0_3, %c0_4] : memref<1x128xf32, #tpu.memory_space<vmem>>, vector<1x128xf32>
    %4 = vector.broadcast %3 : vector<1x128xf32> to vector<8x128xf32>
    %5 = arith.addf %2, %4 : vector<8x128xf32>
    %cst_5 = arith.constant 0.000000e+00 : f32
    %6 = vector.broadcast %cst_5 : f32 to vector<8x128xf32>
    %7 = arith.maximumf %5, %6 : vector<8x128xf32>
    %8 = arith.truncf %7 : vector<8x128xf32> to vector<8x128xbf16>
    %c0_6 = arith.constant 0 : index
    %c0_7 = arith.constant 0 : index
    %9 = vector.load %arg4[%c0_6, %c0_7] : memref<128x128xbf16, #tpu.memory_space<vmem>>, vector<128x128xbf16>
    %cst_8 = arith.constant dense<0.000000e+00> : vector<8x128xf32>
    %10 = tpu.matmul %8, %9, %cst_8 {dimension_numbers = #tpu.dot_dimension_numbers<[1], [0], [0], [1], [0, 0, 1, 1], [], []>} : vector<8x128xbf16>, vector<128x128xbf16>, vector<8x128xf32> -> vector<8x128xf32>
    %c0_9 = arith.constant 0 : index
    %c0_10 = arith.constant 0 : index
    %11 = vector.load %arg5[%c0_9, %c0_10] : memref<1x128xf32, #tpu.memory_space<vmem>>, vector<1x128xf32>
    %12 = vector.broadcast %11 : vector<1x128xf32> to vector<8x128xf32>
    %13 = arith.addf %10, %12 : vector<8x128xf32>
    %cst_11 = arith.constant 0.000000e+00 : f32
    %14 = vector.broadcast %cst_11 : f32 to vector<8x128xf32>
    %15 = arith.maximumf %13, %14 : vector<8x128xf32>
    %16 = arith.truncf %15 : vector<8x128xf32> to vector<8x128xbf16>
    %c0_12 = arith.constant 0 : index
    %c0_13 = arith.constant 0 : index
    %17 = vector.load %arg6[%c0_12, %c0_13] : memref<128x128xbf16, #tpu.memory_space<vmem>>, vector<128x128xbf16>
    %cst_14 = arith.constant dense<0.000000e+00> : vector<8x128xf32>
    %18 = tpu.matmul %16, %17, %cst_14 {dimension_numbers = #tpu.dot_dimension_numbers<[1], [0], [0], [1], [0, 0, 1, 1], [], []>} : vector<8x128xbf16>, vector<128x128xbf16>, vector<8x128xf32> -> vector<8x128xf32>
    %c0_15 = arith.constant 0 : index
    %c0_16 = arith.constant 0 : index
    %19 = vector.load %arg7[%c0_15, %c0_16] : memref<1x128xf32, #tpu.memory_space<vmem>>, vector<1x128xf32>
    %20 = vector.broadcast %19 : vector<1x128xf32> to vector<8x128xf32>
    %21 = arith.addf %18, %20 : vector<8x128xf32>
    %cst_17 = arith.constant 0.000000e+00 : f32
    %22 = vector.broadcast %cst_17 : f32 to vector<8x128xf32>
    %23 = arith.maximumf %21, %22 : vector<8x128xf32>
    %c0_18 = arith.constant 0 : index
    %c0_19 = arith.constant 0 : index
    %24 = vector.load %arg8[%c0_18, %c0_19] : memref<8x128xf32, #tpu.memory_space<vmem>>, vector<8x128xf32>
    tpu.vector_store %arg8[%c0_18, %c0_19], %23 {strides = array<i32>} : memref<8x128xf32, #tpu.memory_space<vmem>>, vector<8x128xf32>,
    return
  }
  func.func @transform_0(%arg0: i32) -> (i32, i32) {
    %c0_i32 = arith.constant 0 : i32
    %c0_i32_0 = arith.constant 0 : i32
    return %arg0, %c0_i32 : i32, i32
  }
  func.func @transform_1(%arg0: i32) -> (i32, i32) {
    %c0_i32 = arith.constant 0 : i32
    %c0_i32_0 = arith.constant 0 : i32
    %c0_i32_1 = arith.constant 0 : i32
    return %c0_i32, %c0_i32_0 : i32, i32
  }
  func.func @transform_2(%arg0: i32) -> (i32, i32) {
    %c0_i32 = arith.constant 0 : i32
    %c0_i32_0 = arith.constant 0 : i32
    %c0_i32_1 = arith.constant 0 : i32
    return %c0_i32, %c0_i32_0 : i32, i32
  }
  func.func @transform_3(%arg0: i32) -> (i32, i32) {
    %c0_i32 = arith.constant 0 : i32
    %c0_i32_0 = arith.constant 0 : i32
    %c0_i32_1 = arith.constant 0 : i32
    return %c0_i32, %c0_i32_0 : i32, i32
  }
  func.func @transform_4(%arg0: i32) -> (i32, i32) {
    %c0_i32 = arith.constant 0 : i32
    %c0_i32_0 = arith.constant 0 : i32
    %c0_i32_1 = arith.constant 0 : i32
    return %c0_i32, %c0_i32_0 : i32, i32
  }
  func.func @transform_5(%arg0: i32) -> (i32, i32) {
    %c0_i32 = arith.constant 0 : i32
    %c0_i32_0 = arith.constant 0 : i32
    %c0_i32_1 = arith.constant 0 : i32
    return %c0_i32, %c0_i32_0 : i32, i32
  }
  func.func @transform_6(%arg0: i32) -> (i32, i32) {
    %c0_i32 = arith.constant 0 : i32
    %c0_i32_0 = arith.constant 0 : i32
    %c0_i32_1 = arith.constant 0 : i32
    return %c0_i32, %c0_i32_0 : i32, i32
  }
  func.func @transform_7(%arg0: i32) -> (i32, i32) {
    %c0_i32 = arith.constant 0 : i32
    %c0_i32_0 = arith.constant 0 : i32
    return %arg0, %c0_i32 : i32, i32
  }
}

</mosaic_0001>

<llo_original>
// kernel: gaze_model_unit.1
$region0: #{gaze_model_unit.1}
  #allocation0 [shape = 'u32[]', space=smem, size = 0x4, offset = 0x4, fixed_abs, tag = 'smem constant byte address 0x4 - core index']
  #allocation1 [shape = 'u32[144,128]{1,0:T(1,128)}', space=vmem, size = 0x12000, scoped, tag = 'internal scratch']
  %s0 = inlined_call_operand.vmem [shape: bf16[8,128], index: 0, kind: input, shape index: {}]
  %s1 = inlined_call_operand.vmem [shape: bf16[128,128], index: 1, kind: input, shape index: {}]
  %s2 = inlined_call_operand.vmem [shape: f32[1,128], index: 2, kind: input, shape index: {}]
  %s3 = inlined_call_operand.vmem [shape: bf16[128,128], index: 3, kind: input, shape index: {}]
  %s4 = inlined_call_operand.vmem [shape: f32[1,128], index: 4, kind: input, shape index: {}]
  %s5 = inlined_call_operand.vmem [shape: bf16[128,128], index: 5, kind: input, shape index: {}]
  %s6 = inlined_call_operand.vmem [shape: f32[1,128], index: 6, kind: input, shape index: {}]
  %s7 = inlined_call_operand.vmem [shape: f32[8,128], index: 7, kind: output, shape index: {}]
  %s8 = sld [smem:[#allocation0]]
  $region38: #{gaze_model_unit.1} parent=0
    _
  %s10 = ssub.s32 1, %s8
  %s11 = scalar_select 0, %s10, %s8
  // Predicated region
  $region2: #{gaze_model_unit.1} parent=0 // pred_check
    _
  $region3: #{gaze_model_unit.1} parent=0 // pred_check_branch
    %13 = sbr.rel (0) target = $region5
  $region4: #{gaze_model_unit.1} parent=0 // pred_region
    _
  $region5: #{gaze_model_unit.1} parent=0 // pred_fallthru
    _
  // Predicated region
  $region6: #{gaze_model_unit.1} parent=0 // pred_check
    _
  $region7: #{gaze_model_unit.1} parent=0 // pred_check_branch
    %15 = sbr.rel (0) target = $region9
  $region8: #{gaze_model_unit.1} parent=0 // pred_region
    _
  $region9: #{gaze_model_unit.1} parent=0 // pred_fallthru
    _
  // Predicated region
  $region10: #{gaze_model_unit.1} parent=0 // pred_check
    _
  $region11: #{gaze_model_unit.1} parent=0 // pred_check_branch
    %17 = sbr.rel (0) target = $region13
  $region12: #{gaze_model_unit.1} parent=0 // pred_region
    _
  $region13: #{gaze_model_unit.1} parent=0 // pred_fallthru
    _
  // Predicated region
  $region14: #{gaze_model_unit.1} parent=0 // pred_check
    _
  $region15: #{gaze_model_unit.1} parent=0 // pred_check_branch
    %19 = sbr.rel (0) target = $region17
  $region16: #{gaze_model_unit.1} parent=0 // pred_region
    _
  $region17: #{gaze_model_unit.1} parent=0 // pred_fallthru
    _
  // Predicated region
  $region18: #{gaze_model_unit.1} parent=0 // pred_check
    _
  $region19: #{gaze_model_unit.1} parent=0 // pred_check_branch
    %21 = sbr.rel (0) target = $region21
  $region20: #{gaze_model_unit.1} parent=0 // pred_region
    _
  $region21: #{gaze_model_unit.1} parent=0 // pred_fallthru
    _
  // Predicated region
  $region22: #{gaze_model_unit.1} parent=0 // pred_check
    _
  $region23: #{gaze_model_unit.1} parent=0 // pred_check_branch
    %23 = sbr.rel (0) target = $region25
  $region24: #{gaze_model_unit.1} parent=0 // pred_region
    _
  $region25: #{gaze_model_unit.1} parent=0 // pred_fallthru
    _
  // Predicated region
  $region26: #{gaze_model_unit.1} parent=0 // pred_check
    _
  $region27: #{gaze_model_unit.1} parent=0 // pred_check_branch
    %25 = sbr.rel (0) target = $region29
  $region28: #{gaze_model_unit.1} parent=0 // pred_region
    _
  $region29: #{gaze_model_unit.1} parent=0 // pred_fallthru
    _
  %v27 = vld [vmem:[%s0] sm:$0xf]
  %v28 = vld [vmem:[%s1] sm:$0xf]
  %v29 = vld [vmem:[%s1 + $0x4] sm:$0xf]
  %v30 = vld [vmem:[%s1 + $0x8] sm:$0xf]
  %v31 = vld [vmem:[%s1 + $0xc] sm:$0xf]
  %v32 = vld [vmem:[%s1 + $0x10] sm:$0xf]
  %v33 = vld [vmem:[%s1 + $0x14] sm:$0xf]
  %v34 = vld [vmem:[%s1 + $0x18] sm:$0xf]
  %v35 = vld [vmem:[%s1 + $0x1c] sm:$0xf]
  %v36 = vld [vmem:[%s1 + $0x20] sm:$0xf]
  %v37 = vld [vmem:[%s1 + $0x24] sm:$0xf]
  %v38 = vld [vmem:[%s1 + $0x28] sm:$0xf]
  %v39 = vld [vmem:[%s1 + $0x2c] sm:$0xf]
  %v40 = vld [vmem:[%s1 + $0x30] sm:$0xf]
  %v41 = vld [vmem:[%s1 + $0x34] sm:$0xf]
  %v42 = vld [vmem:[%s1 + $0x38] sm:$0xf]
  %v43 = vld [vmem:[%s1 + $0x3c] sm:$0xf]
  %v44 = vld [vmem:[%s2] sm:$0x1]
  %v46 = vlaneseq
  %v47 = vshrl.u32 %v46, 7
  %v48 = vsub.s32 0, %v47
  %v49 = vrot.slane %v44, %v48
  %v67 = vunpack.c.l.b16 %v28
  %v68 = vunpack.c.l.b16 %v29
  %v69 = vunpack.c.l.b16 %v30
  %v70 = vunpack.c.l.b16 %v31
  %v71 = vunpack.c.l.b16 %v32
  %v72 = vunpack.c.l.b16 %v33
  %v73 = vunpack.c.l.b16 %v34
  %v74 = vunpack.c.l.b16 %v35
  %v75 = vunpack.c.l.b16 %v36
  %v76 = vunpack.c.l.b16 %v37
  %v77 = vunpack.c.l.b16 %v38
  %v78 = vunpack.c.l.b16 %v39
  %v79 = vunpack.c.l.b16 %v40
  %v80 = vunpack.c.l.b16 %v41
  %v81 = vunpack.c.l.b16 %v42
  %v82 = vunpack.c.l.b16 %v43
  %v83 = vpack.c.b16 %v68, %v67
  %v84 = vpack.c.b16 %v70, %v69
  %v85 = vpack.c.b16 %v72, %v71
  %v86 = vpack.c.b16 %v74, %v73
  %v87 = vpack.c.b16 %v76, %v75
  %v88 = vpack.c.b16 %v78, %v77
  %v89 = vpack.c.b16 %v80, %v79
  %v90 = vpack.c.b16 %v82, %v81
  %99 = vmatprep.subr.bf16.mxu0 0
  %100 = vmatpush1.bf16.msra.mxu0 %v90
  %101 = vmatprep.subr.bf16.mxu0 0
  %102 = vmatpush1.bf16.msra.mxu0 %v89
  %103 = vmatprep.subr.bf16.mxu0 0
  %104 = vmatpush1.bf16.msra.mxu0 %v88
  %105 = vmatprep.subr.bf16.mxu0 0
  %106 = vmatpush1.bf16.msra.mxu0 %v87
  %107 = vmatprep.subr.bf16.mxu0 0
  %108 = vmatpush1.bf16.msra.mxu0 %v86
  %109 = vmatprep.subr.bf16.mxu0 0
  %110 = vmatpush1.bf16.msra.mxu0 %v85
  %111 = vmatprep.subr.bf16.mxu0 0
  %112 = vmatpush1.bf16.msra.mxu0 %v84
  %113 = vmatprep.subr.bf16.mxu0 0
  %114 = vmatpush1.bf16.msra.mxu0 %v83
  %115 = vmatprep.subr.bf16.mxu0 0
  %116 = vmatpush2.bf16.msra.mxu0 0
  %117 = vmatprep.subr.bf16.mxu0 0
  %118 = vmatpush2.bf16.msra.mxu0 0
  %119 = vmatprep.subr.bf16.mxu0 0
  %120 = vmatpush2.bf16.msra.mxu0 0
  %121 = vmatprep.subr.bf16.mxu0 0
  %122 = vmatpush2.bf16.msra.mxu0 0
  %123 = vmatprep.subr.bf16.mxu0 0
  %124 = vmatpush2.bf16.msra.mxu0 0
  %125 = vmatprep.subr.bf16.mxu0 0
  %126 = vmatpush2.bf16.msra.mxu0 0
  %127 = vmatprep.subr.bf16.mxu0 0
  %128 = vmatpush2.bf16.msra.mxu0 0
  %129 = vmatprep.subr.bf16.mxu0 0
  %130 = vmatpush2.bf16.msra.mxu0 0
  %131 = vmatprep.mubr.bf16.mxu0 0
  %132 = vmatmul.mubr.bf16.gmra.mxu0 %v27
  %v133 = vpop.f32.mrf.mxu0
  %v134 = vadd.f32 %v49, %v133
  %v135 = vpop.f32.mrf.mxu0
  %v136 = vpop.f32.mrf.mxu0
  %v137 = vpop.f32.mrf.mxu0
  %138 = vdwg.mxu0
  %v139 = vmax.f32 %v134, 0.0
  %v140 = vpack.c.bf16 %v139, %v139
  %v141 = vld [vmem:[%s3] sm:$0xf]
  %v142 = vld [vmem:[%s3 + $0x4] sm:$0xf]
  %v143 = vld [vmem:[%s3 + $0x8] sm:$0xf]
  %v144 = vld [vmem:[%s3 + $0xc] sm:$0xf]
  %v145 = vld [vmem:[%s3 + $0x10] sm:$0xf]
  %v146 = vld [vmem:[%s3 + $0x14] sm:$0xf]
  %v147 = vld [vmem:[%s3 + $0x18] sm:$0xf]
  %v148 = vld [vmem:[%s3 + $0x1c] sm:$0xf]
  %v149 = vld [vmem:[%s3 + $0x20] sm:$0xf]
  %v150 = vld [vmem:[%s3 + $0x24] sm:$0xf]
  %v151 = vld [vmem:[%s3 + $0x28] sm:$0xf]
  %v152 = vld [vmem:[%s3 + $0x2c] sm:$0xf]
  %v153 = vld [vmem:[%s3 + $0x30] sm:$0xf]
  %v154 = vld [vmem:[%s3 + $0x34] sm:$0xf]
  %v155 = vld [vmem:[%s3 + $0x38] sm:$0xf]
  %v156 = vld [vmem:[%s3 + $0x3c] sm:$0xf]
  %v157 = vld [vmem:[%s4] sm:$0x1]
  %v159 = vlaneseq
  %v160 = vshrl.u32 %v159, 7
  %v161 = vsub.s32 0, %v160
  %v162 = vrot.slane %v157, %v161
  %v180 = vunpack.c.l.b16 %v141
  %v181 = vunpack.c.l.b16 %v142
  %v182 = vunpack.c.l.b16 %v143
  %v183 = vunpack.c.l.b16 %v144
  %v184 = vunpack.c.l.b16 %v145
  %v185 = vunpack.c.l.b16 %v146
  %v186 = vunpack.c.l.b16 %v147
  %v187 = vunpack.c.l.b16 %v148
  %v188 = vunpack.c.l.b16 %v149
  %v189 = vunpack.c.l.b16 %v150
  %v190 = vunpack.c.l.b16 %v151
  %v191 = vunpack.c.l.b16 %v152
  %v192 = vunpack.c.l.b16 %v153
  %v193 = vunpack.c.l.b16 %v154
  %v194 = vunpack.c.l.b16 %v155
  %v195 = vunpack.c.l.b16 %v156
  %v196 = vpack.c.b16 %v181, %v180
  %v197 = vpack.c.b16 %v183, %v182
  %v198 = vpack.c.b16 %v185, %v184
  %v199 = vpack.c.b16 %v187, %v186
  %v200 = vpack.c.b16 %v189, %v188
  %v201 = vpack.c.b16 %v191, %v190
  %v202 = vpack.c.b16 %v193, %v192
  %v203 = vpack.c.b16 %v195, %v194
  %212 = vmatprep.subr.bf16.mxu0 0
  %213 = vmatpush1.bf16.msra.mxu0 %v203
  %214 = vmatprep.subr.bf16.mxu0 0
  %215 = vmatpush1.bf16.msra.mxu0 %v202
  %216 = vmatprep.subr.bf16.mxu0 0
  %217 = vmatpush1.bf16.msra.mxu0 %v201
  %218 = vmatprep.subr.bf16.mxu0 0
  %219 = vmatpush1.bf16.msra.mxu0 %v200
  %220 = vmatprep.subr.bf16.mxu0 0
  %221 = vmatpush1.bf16.msra.mxu0 %v199
  %222 = vmatprep.subr.bf16.mxu0 0
  %223 = vmatpush1.bf16.msra.mxu0 %v198
  %224 = vmatprep.subr.bf16.mxu0 0
  %225 = vmatpush1.bf16.msra.mxu0 %v197
  %226 = vmatprep.subr.bf16.mxu0 0
  %227 = vmatpush1.bf16.msra.mxu0 %v196
  %228 = vmatprep.subr.bf16.mxu0 0
  %229 = vmatpush2.bf16.msra.mxu0 0
  %230 = vmatprep.subr.bf16.mxu0 0
  %231 = vmatpush2.bf16.msra.mxu0 0
  %232 = vmatprep.subr.bf16.mxu0 0
  %233 = vmatpush2.bf16.msra.mxu0 0
  %234 = vmatprep.subr.bf16.mxu0 0
  %235 = vmatpush2.bf16.msra.mxu0 0
  %236 = vmatprep.subr.bf16.mxu0 0
  %237 = vmatpush2.bf16.msra.mxu0 0
  %238 = vmatprep.subr.bf16.mxu0 0
  %239 = vmatpush2.bf16.msra.mxu0 0
  %240 = vmatprep.subr.bf16.mxu0 0
  %241 = vmatpush2.bf16.msra.mxu0 0
  %242 = vmatprep.subr.bf16.mxu0 0
  %243 = vmatpush2.bf16.msra.mxu0 0
  %244 = vmatprep.mubr.bf16.mxu0 0
  %245 = vmatmul.mubr.bf16.gmra.mxu0 %v140
  %v246 = vpop.f32.mrf.mxu0
  %v247 = vadd.f32 %v162, %v246
  %v248 = vpop.f32.mrf.mxu0
  %v249 = vpop.f32.mrf.mxu0
  %v250 = vpop.f32.mrf.mxu0
  %251 = vdwg.mxu0
  %v252 = vmax.f32 %v247, 0.0
  %v253 = vpack.c.bf16 %v252, %v252
  %v254 = vld [vmem:[%s5] sm:$0xf]
  %v255 = vld [vmem:[%s5 + $0x4] sm:$0xf]
  %v256 = vld [vmem:[%s5 + $0x8] sm:$0xf]
  %v257 = vld [vmem:[%s5 + $0xc] sm:$0xf]
  %v258 = vld [vmem:[%s5 + $0x10] sm:$0xf]
  %v259 = vld [vmem:[%s5 + $0x14] sm:$0xf]
  %v260 = vld [vmem:[%s5 + $0x18] sm:$0xf]
  %v261 = vld [vmem:[%s5 + $0x1c] sm:$0xf]
  %v262 = vld [vmem:[%s5 + $0x20] sm:$0xf]
  %v263 = vld [vmem:[%s5 + $0x24] sm:$0xf]
  %v264 = vld [vmem:[%s5 + $0x28] sm:$0xf]
  %v265 = vld [vmem:[%s5 + $0x2c] sm:$0xf]
  %v266 = vld [vmem:[%s5 + $0x30] sm:$0xf]
  %v267 = vld [vmem:[%s5 + $0x34] sm:$0xf]
  %v268 = vld [vmem:[%s5 + $0x38] sm:$0xf]
  %v269 = vld [vmem:[%s5 + $0x3c] sm:$0xf]
  %v270 = vld [vmem:[%s6] sm:$0x1]
  %v272 = vlaneseq
  %v273 = vshrl.u32 %v272, 7
  %v274 = vsub.s32 0, %v273
  %v275 = vrot.slane %v270, %v274
  %v293 = vunpack.c.l.b16 %v254
  %v294 = vunpack.c.l.b16 %v255
  %v295 = vunpack.c.l.b16 %v256
  %v296 = vunpack.c.l.b16 %v257
  %v297 = vunpack.c.l.b16 %v258
  %v298 = vunpack.c.l.b16 %v259
  %v299 = vunpack.c.l.b16 %v260
  %v300 = vunpack.c.l.b16 %v261
  %v301 = vunpack.c.l.b16 %v262
  %v302 = vunpack.c.l.b16 %v263
  %v303 = vunpack.c.l.b16 %v264
  %v304 = vunpack.c.l.b16 %v265
  %v305 = vunpack.c.l.b16 %v266
  %v306 = vunpack.c.l.b16 %v267
  %v307 = vunpack.c.l.b16 %v268
  %v308 = vunpack.c.l.b16 %v269
  %v309 = vpack.c.b16 %v294, %v293
  %v310 = vpack.c.b16 %v296, %v295
  %v311 = vpack.c.b16 %v298, %v297
  %v312 = vpack.c.b16 %v300, %v299
  %v313 = vpack.c.b16 %v302, %v301
  %v314 = vpack.c.b16 %v304, %v303
  %v315 = vpack.c.b16 %v306, %v305
  %v316 = vpack.c.b16 %v308, %v307
  %325 = vmatprep.subr.bf16.mxu0 0
  %326 = vmatpush1.bf16.msra.mxu0 %v316
  %327 = vmatprep.subr.bf16.mxu0 0
  %328 = vmatpush1.bf16.msra.mxu0 %v315
  %329 = vmatprep.subr.bf16.mxu0 0
  %330 = vmatpush1.bf16.msra.mxu0 %v314
  %331 = vmatprep.subr.bf16.mxu0 0
  %332 = vmatpush1.bf16.msra.mxu0 %v313
  %333 = vmatprep.subr.bf16.mxu0 0
  %334 = vmatpush1.bf16.msra.mxu0 %v312
  %335 = vmatprep.subr.bf16.mxu0 0
  %336 = vmatpush1.bf16.msra.mxu0 %v311
  %337 = vmatprep.subr.bf16.mxu0 0
  %338 = vmatpush1.bf16.msra.mxu0 %v310
  %339 = vmatprep.subr.bf16.mxu0 0
  %340 = vmatpush1.bf16.msra.mxu0 %v309
  %341 = vmatprep.subr.bf16.mxu0 0
  %342 = vmatpush2.bf16.msra.mxu0 0
  %343 = vmatprep.subr.bf16.mxu0 0
  %344 = vmatpush2.bf16.msra.mxu0 0
  %345 = vmatprep.subr.bf16.mxu0 0
  %346 = vmatpush2.bf16.msra.mxu0 0
  %347 = vmatprep.subr.bf16.mxu0 0
  %348 = vmatpush2.bf16.msra.mxu0 0
  %349 = vmatprep.subr.bf16.mxu0 0
  %350 = vmatpush2.bf16.msra.mxu0 0
  %351 = vmatprep.subr.bf16.mxu0 0
  %352 = vmatpush2.bf16.msra.mxu0 0
  %353 = vmatprep.subr.bf16.mxu0 0
  %354 = vmatpush2.bf16.msra.mxu0 0
  %355 = vmatprep.subr.bf16.mxu0 0
  %356 = vmatpush2.bf16.msra.mxu0 0
  %357 = vmatprep.mubr.bf16.mxu0 0
  %358 = vmatmul.mubr.bf16.gmra.mxu0 %v253
  %v359 = vpop.f32.mrf.mxu0
  %v360 = vadd.f32 %v275, %v359
  %v361 = vpop.f32.mrf.mxu0
  %v362 = vpop.f32.mrf.mxu0
  %v363 = vpop.f32.mrf.mxu0
  %364 = vdwg.mxu0
  %v365 = vmax.f32 %v360, 0.0
  %366 = vst [vmem:[%s7] sm:$0xff] %v365
  // Predicated region
  $region30: #{gaze_model_unit.1} parent=0 // pred_check
    _
  $region31: #{gaze_model_unit.1} parent=0 // pred_check_branch
    %368 = sbr.rel (0) target = $region33
  $region32: #{gaze_model_unit.1} parent=0 // pred_region
    _
  $region33: #{gaze_model_unit.1} parent=0 // pred_fallthru
    _
  // Predicated region
  $region34: #{gaze_model_unit.1} parent=0 // pred_check
    _
  $region35: #{gaze_model_unit.1} parent=0 // pred_check_branch
    %370 = sbr.rel (0) target = $region37
  $region36: #{gaze_model_unit.1} parent=0 // pred_region
    _
  $region37: #{gaze_model_unit.1} parent=0 // pred_fallthru
    _

</llo_original>
